<compile_context>
chip_gen: v6e
topology: v6e:2x2x1
jax: 0.10.0
libtpu: 0.0.40
codegen_flags: <defaults>
</compile_context>

<pallas_src>
import functools

import jax
import jax.numpy as jnp
from jax import lax
from jax.experimental import pallas as pl
from jax.experimental.pallas import tpu as pltpu


def _round_up(x, m):
    return (x + m - 1) // m * m


def _cosine_loss_kernel(x_ref, y_ref, o_ref, dot_acc, xx_acc, yy_acc, *,
                        eps, valid_d, td, sub_d, mask_d):
    """One (B-tile, D-tile) grid step.

    Accumulates lane-dense (tb, 128) partials of dot / |x|^2 / |y|^2 over the
    D axis; at the last D tile, reduces 128 -> 1 and writes per-row
    (1 - cos_sim) for this B tile.
    """
    k = pl.program_id(1)

    @pl.when(k == 0)
    def _init():
        dot_acc[...] = jnp.zeros_like(dot_acc)
        xx_acc[...] = jnp.zeros_like(xx_acc)
        yy_acc[...] = jnp.zeros_like(yy_acc)

    n_sub = td // sub_d
    n_fold = sub_d // 128
    tb = dot_acc.shape[0]

    # Hoisted once per step (JAX does not CSE broadcast_in_dim inside loops).
    if mask_d:
        lane_iota = lax.broadcasted_iota(jnp.int32, (tb, sub_d), 1)
        col_base = k * td

    def lane_fold(a):
        # (tb, sub_d) -> (tb, 128) using lane-tile-aligned static slices + VALU
        # adds only (no XLU cross-lane reduce, no relayout-inducing reshape).
        r = a[:, 0:128]
        for t in range(1, n_fold):
            r = r + a[:, t * 128:(t + 1) * 128]
        return r

    # Process the (possibly multi-MiB) DMA block in 512-lane sub-slices so the
    # f32 upcast / product temporaries stay small, independent of block size.
    for j in range(n_sub):
        c0 = j * sub_d
        x = x_ref[:, c0:c0 + sub_d].astype(jnp.float32)
        y = y_ref[:, c0:c0 + sub_d].astype(jnp.float32)
        if mask_d:
            # Zero out-of-range D lanes (only emitted when D % td != 0).
            valid = (col_base + c0 + lane_iota) < valid_d
            x = jnp.where(valid, x, 0.0)
            y = jnp.where(valid, y, 0.0)
        dot_acc[...] += lane_fold(x * y)
        xx_acc[...] += lane_fold(x * x)
        yy_acc[...] += lane_fold(y * y)

    @pl.when(k == pl.num_programs(1) - 1)
    def _finalize():
        # Single cross-lane reduce + exact sqrt/divide, once per B tile, so the
        # epilogue cost is negligible and eps semantics match the reference.
        dot = jnp.sum(dot_acc[...], axis=1, keepdims=True)
        xx = jnp.sum(xx_acc[...], axis=1, keepdims=True)
        yy = jnp.sum(yy_acc[...], axis=1, keepdims=True)
        denom = jnp.sqrt(xx) * jnp.sqrt(yy) + eps
        o_ref[...] = 1.0 - dot / denom


def cosine_loss(inp, target, eps=1e-15, block_b=256, block_d_bytes=4 * 1024 * 1024):
    """loss = sum_i (1 - cos_sim(inp_i, target_i)) / B, matching CosineLoss.forward."""
    if inp.ndim > 2:
        b = inp.shape[0]
        inp = inp.reshape(b, -1)
        target = target.reshape(b, -1)
    assert inp.shape == target.shape
    B, D = inp.shape
    itemsize = jnp.dtype(inp.dtype).itemsize

    # Sublane alignment follows dtype packing (f32: 8, bf16: 16, int8: 32).
    sub = 8 * max(1, 4 // itemsize)

    # --- B tile: aligned to packing; guarantee >=2 B tiles when the batch
    # allows it so both v7x TensorCores get work on the parallel axis.
    tb = min(block_b, _round_up(B, sub))
    if B >= 2 * sub:
        tb = min(tb, _round_up(-(-B // 2), sub))
    tb = max(tb, sub)

    # --- D tile sized in *bytes* so every DMA step moves ~block_d_bytes of
    # each input regardless of dtype (bf16 -> 2x elements, int8 -> 4x).
    td = max(512, block_d_bytes // max(1, tb * itemsize))
    td = _round_up(td, 512)
    td = min(td, _round_up(D, 128))
    sub_d = 512 if td % 512 == 0 else 128
    mask_d = (D % td) != 0

    grid = (pl.cdiv(B, tb), pl.cdiv(D, td))

    # VMEM budget: 2 inputs x 2 pipeline buffers x native-dtype block, plus the
    # lane-dense accumulators and a generous bound on in-kernel f32 temporaries
    # (per 512-lane sub-slice), plus the tiny output.  Stays under v7x's 64 MiB
    # physical VMEM at the default 4 MiB/input blocks.
    in_block_bytes = tb * td * itemsize
    acc_bytes = 3 * tb * 128 * 4
    temp_bytes = 8 * tb * sub_d * 4
    vmem_bytes = 2 * 2 * in_block_bytes + acc_bytes + temp_bytes + 2 * tb * 4
    vmem_limit = int(vmem_bytes * 1.25) + (2 << 20)
    vmem_limit = max(16 * 1024 * 1024, min(vmem_limit, 64 * 1024 * 1024))

    cost = pl.CostEstimate(
        flops=6 * B * D,
        transcendentals=0,
        bytes_accessed=2 * B * D * itemsize + B * 4,
    )

    per_row = pl.pallas_call(
        functools.partial(
            _cosine_loss_kernel,
            eps=float(eps), valid_d=D, td=td, sub_d=sub_d, mask_d=mask_d,
        ),
        out_shape=jax.ShapeDtypeStruct((B, 1), jnp.float32),
        grid_spec=pltpu.PrefetchScalarGridSpec(
            num_scalar_prefetch=0,
            grid=grid,
            in_specs=[
                pl.BlockSpec((tb, td), lambda i, k: (i, k)),
                pl.BlockSpec((tb, td), lambda i, k: (i, k)),
            ],
            # Same output block across the D axis => resident accumulator,
            # written only at the final D step.
            out_specs=pl.BlockSpec((tb, 1), lambda i, k: (i, 0)),
            scratch_shapes=[
                pltpu.VMEM((tb, 128), jnp.float32),  # dot accumulator
                pltpu.VMEM((tb, 128), jnp.float32),  # |x|^2 accumulator
                pltpu.VMEM((tb, 128), jnp.float32),  # |y|^2 accumulator
            ],
        ),
        compiler_params=pltpu.CompilerParams(
            dimension_semantics=("parallel", "arbitrary"),
            vmem_limit_bytes=vmem_limit,
        ),
        cost_estimate=cost,
    )(inp, target)

    # Divide by the true *global* batch size (ragged B rows never reach here:
    # the output array is exactly (B, 1)).
    return jnp.sum(per_row[:, 0]) / B


def _reference_cosine_loss(inp, target, eps=1e-15):
    if inp.ndim > 2:
        b = inp.shape[0]
        inp = inp.reshape(b, -1)
        target = target.reshape(b, -1)
    inp = inp.astype(jnp.float32)
    target = target.astype(jnp.float32)
    dot = jnp.sum(inp * target, axis=1)
    denom = jnp.linalg.norm(inp, axis=1) * jnp.linalg.norm(target, axis=1) + eps
    sim = dot / denom
    return jnp.sum(1.0 - sim) / inp.shape[0]


if __name__ == "__main__":
    key = jax.random.PRNGKey(0)
    k1, k2, k3, k4, k5, k6, k7, k8 = jax.random.split(key, 8)

    # 3-D input like a batch of 2-D tensors (B, H, W) -> flattened to (B, H*W).
    inp = jax.random.normal(k1, (2, 16, 16), dtype=jnp.float32)
    target = jax.random.normal(k2, (2, 16, 16), dtype=jnp.float32)
    loss = cosine_loss(inp, target)
    jax.block_until_ready(loss)
    ref = _reference_cosine_loss(inp, target)
    assert jnp.allclose(loss, ref, atol=1e-5, rtol=1e-5), (loss, ref)

    # Larger 2-D case: multiple B tiles (megacore path) on one D tile.
    inp2 = jax.random.normal(k3, (64, 2048), dtype=jnp.float32)
    target2 = jax.random.normal(k4, (64, 2048), dtype=jnp.float32)
    loss2 = cosine_loss(inp2, target2)
    jax.block_until_ready(loss2)
    ref2 = _reference_cosine_loss(inp2, target2)
    assert jnp.allclose(loss2, ref2, atol=1e-5, rtol=1e-5), (loss2, ref2)

    # Ragged case: B and D not tile multiples -> exercises the in-kernel lane
    # mask (no host-side padding anymore).
    inp3 = jax.random.normal(k5, (10, 300), dtype=jnp.float32)
    target3 = jax.random.normal(k6, (10, 300), dtype=jnp.float32)
    loss3 = cosine_loss(inp3, target3)
    jax.block_until_ready(loss3)
    ref3 = _reference_cosine_loss(inp3, target3)
    assert jnp.allclose(loss3, ref3, atol=1e-5, rtol=1e-5), (loss3, ref3)

    # bf16 inputs: byte-scaled D tile, f32 in-kernel accumulation.
    inp4 = jax.random.normal(k7, (32, 1000), dtype=jnp.bfloat16)
    target4 = jax.random.normal(k8, (32, 1000), dtype=jnp.bfloat16)
    loss4 = cosine_loss(inp4, target4)
    jax.block_until_ready(loss4)
    ref4 = _reference_cosine_loss(inp4, target4)
    assert jnp.allclose(loss4, ref4, atol=1e-3, rtol=1e-3), (loss4, ref4)

    print("KERNEL_OK")
</pallas_src>

<mosaic_0001>
module attributes {stable_mosaic.version = 11 : i64} {
  func.func @_cosine_loss_kernel(%arg0: i32, %arg1: i32, %arg2: memref<8x256xf32, #tpu.memory_space<vmem>>, %arg3: memref<8x256xf32, #tpu.memory_space<vmem>>, %arg4: memref<8x1xf32, #tpu.memory_space<vmem>>, %arg5: memref<8x128xf32, #tpu.memory_space<vmem>>, %arg6: memref<8x128xf32, #tpu.memory_space<vmem>>, %arg7: memref<8x128xf32, #tpu.memory_space<vmem>>) attributes {dimension_semantics = [#tpu.dimension_semantics<parallel>, #tpu.dimension_semantics<arbitrary>], iteration_bounds = array<i64: 1, 1>, scalar_prefetch = 0 : i64, scratch_operands = 3 : i64, tpu.core_type = #tpu.core_type<tc>, window_params = [{transform_indices = @transform_0, window_bounds = array<i64: 8, 256>}, {transform_indices = @transform_1, window_bounds = array<i64: 8, 256>}, {transform_indices = @transform_2, window_bounds = array<i64: 8, 1>}]} {
    %c0_i32 = arith.constant 0 : i32
    %0 = arith.cmpi eq, %arg1, %c0_i32 : i32
    %1 = arith.extui %0 : i1 to i32
    %c0_i32_0 = arith.constant 0 : i32
    %2 = arith.cmpi ne, %1, %c0_i32_0 : i32
    scf.if %2 {
      %cst = arith.constant 0.000000e+00 : f32
      %34 = vector.broadcast %cst : f32 to vector<8x128xf32>
      %c0_33 = arith.constant 0 : index
      %c0_34 = arith.constant 0 : index
      %35 = vector.load %arg5[%c0_33, %c0_34] : memref<8x128xf32, #tpu.memory_space<vmem>>, vector<8x128xf32>
      tpu.vector_store %arg5[%c0_33, %c0_34], %34 {strides = array<i32>} : memref<8x128xf32, #tpu.memory_space<vmem>>, vector<8x128xf32>,
      %cst_35 = arith.constant 0.000000e+00 : f32
      %36 = vector.broadcast %cst_35 : f32 to vector<8x128xf32>
      %c0_36 = arith.constant 0 : index
      %c0_37 = arith.constant 0 : index
      %37 = vector.load %arg6[%c0_36, %c0_37] : memref<8x128xf32, #tpu.memory_space<vmem>>, vector<8x128xf32>
      tpu.vector_store %arg6[%c0_36, %c0_37], %36 {strides = array<i32>} : memref<8x128xf32, #tpu.memory_space<vmem>>, vector<8x128xf32>,
      %cst_38 = arith.constant 0.000000e+00 : f32
      %38 = vector.broadcast %cst_38 : f32 to vector<8x128xf32>
      %c0_39 = arith.constant 0 : index
      %c0_40 = arith.constant 0 : index
      %39 = vector.load %arg7[%c0_39, %c0_40] : memref<8x128xf32, #tpu.memory_space<vmem>>, vector<8x128xf32>
      tpu.vector_store %arg7[%c0_39, %c0_40], %38 {strides = array<i32>} : memref<8x128xf32, #tpu.memory_space<vmem>>, vector<8x128xf32>,
    } else {
    }
    %c0 = arith.constant 0 : index
    %c0_1 = arith.constant 0 : index
    %3 = vector.load %arg2[%c0, %c0_1] : memref<8x256xf32, #tpu.memory_space<vmem>>, vector<8x128xf32>
    %c0_2 = arith.constant 0 : index
    %c0_3 = arith.constant 0 : index
    %4 = vector.load %arg3[%c0_2, %c0_3] : memref<8x256xf32, #tpu.memory_space<vmem>>, vector<8x128xf32>
    %c0_4 = arith.constant 0 : index
    %c0_5 = arith.constant 0 : index
    %5 = vector.load %arg5[%c0_4, %c0_5] : memref<8x128xf32, #tpu.memory_space<vmem>>, vector<8x128xf32>
    %6 = arith.mulf %3, %4 : vector<8x128xf32>
    %7 = arith.addf %5, %6 : vector<8x128xf32>
    %c0_6 = arith.constant 0 : index
    %c0_7 = arith.constant 0 : index
    %8 = vector.load %arg5[%c0_6, %c0_7] : memref<8x128xf32, #tpu.memory_space<vmem>>, vector<8x128xf32>
    tpu.vector_store %arg5[%c0_6, %c0_7], %7 {strides = array<i32>} : memref<8x128xf32, #tpu.memory_space<vmem>>, vector<8x128xf32>,
    %c0_8 = arith.constant 0 : index
    %c0_9 = arith.constant 0 : index
    %9 = vector.load %arg6[%c0_8, %c0_9] : memref<8x128xf32, #tpu.memory_space<vmem>>, vector<8x128xf32>
    %10 = arith.mulf %3, %3 : vector<8x128xf32>
    %11 = arith.addf %9, %10 : vector<8x128xf32>
    %c0_10 = arith.constant 0 : index
    %c0_11 = arith.constant 0 : index
    %12 = vector.load %arg6[%c0_10, %c0_11] : memref<8x128xf32, #tpu.memory_space<vmem>>, vector<8x128xf32>
    tpu.vector_store %arg6[%c0_10, %c0_11], %11 {strides = array<i32>} : memref<8x128xf32, #tpu.memory_space<vmem>>, vector<8x128xf32>,
    %c0_12 = arith.constant 0 : index
    %c0_13 = arith.constant 0 : index
    %13 = vector.load %arg7[%c0_12, %c0_13] : memref<8x128xf32, #tpu.memory_space<vmem>>, vector<8x128xf32>
    %14 = arith.mulf %4, %4 : vector<8x128xf32>
    %15 = arith.addf %13, %14 : vector<8x128xf32>
    %c0_14 = arith.constant 0 : index
    %c0_15 = arith.constant 0 : index
    %16 = vector.load %arg7[%c0_14, %c0_15] : memref<8x128xf32, #tpu.memory_space<vmem>>, vector<8x128xf32>
    tpu.vector_store %arg7[%c0_14, %c0_15], %15 {strides = array<i32>} : memref<8x128xf32, #tpu.memory_space<vmem>>, vector<8x128xf32>,
    %c0_16 = arith.constant 0 : index
    %c128 = arith.constant 128 : index
    %17 = vector.load %arg2[%c0_16, %c128] : memref<8x256xf32, #tpu.memory_space<vmem>>, vector<8x128xf32>
    %c0_17 = arith.constant 0 : index
    %c128_18 = arith.constant 128 : index
    %18 = vector.load %arg3[%c0_17, %c128_18] : memref<8x256xf32, #tpu.memory_space<vmem>>, vector<8x128xf32>
    %c0_19 = arith.constant 0 : index
    %c0_20 = arith.constant 0 : index
    %19 = vector.load %arg5[%c0_19, %c0_20] : memref<8x128xf32, #tpu.memory_space<vmem>>, vector<8x128xf32>
    %20 = arith.mulf %17, %18 : vector<8x128xf32>
    %21 = arith.addf %19, %20 : vector<8x128xf32>
    %c0_21 = arith.constant 0 : index
    %c0_22 = arith.constant 0 : index
    %22 = vector.load %arg5[%c0_21, %c0_22] : memref<8x128xf32, #tpu.memory_space<vmem>>, vector<8x128xf32>
    tpu.vector_store %arg5[%c0_21, %c0_22], %21 {strides = array<i32>} : memref<8x128xf32, #tpu.memory_space<vmem>>, vector<8x128xf32>,
    %c0_23 = arith.constant 0 : index
    %c0_24 = arith.constant 0 : index
    %23 = vector.load %arg6[%c0_23, %c0_24] : memref<8x128xf32, #tpu.memory_space<vmem>>, vector<8x128xf32>
    %24 = arith.mulf %17, %17 : vector<8x128xf32>
    %25 = arith.addf %23, %24 : vector<8x128xf32>
    %c0_25 = arith.constant 0 : index
    %c0_26 = arith.constant 0 : index
    %26 = vector.load %arg6[%c0_25, %c0_26] : memref<8x128xf32, #tpu.memory_space<vmem>>, vector<8x128xf32>
    tpu.vector_store %arg6[%c0_25, %c0_26], %25 {strides = array<i32>} : memref<8x128xf32, #tpu.memory_space<vmem>>, vector<8x128xf32>,
    %c0_27 = arith.constant 0 : index
    %c0_28 = arith.constant 0 : index
    %27 = vector.load %arg7[%c0_27, %c0_28] : memref<8x128xf32, #tpu.memory_space<vmem>>, vector<8x128xf32>
    %28 = arith.mulf %18, %18 : vector<8x128xf32>
    %29 = arith.addf %27, %28 : vector<8x128xf32>
    %c0_29 = arith.constant 0 : index
    %c0_30 = arith.constant 0 : index
    %30 = vector.load %arg7[%c0_29, %c0_30] : memref<8x128xf32, #tpu.memory_space<vmem>>, vector<8x128xf32>
    tpu.vector_store %arg7[%c0_29, %c0_30], %29 {strides = array<i32>} : memref<8x128xf32, #tpu.memory_space<vmem>>, vector<8x128xf32>,
    %c0_i32_31 = arith.constant 0 : i32
    %31 = arith.cmpi eq, %arg1, %c0_i32_31 : i32
    %32 = arith.extui %31 : i1 to i32
    %c0_i32_32 = arith.constant 0 : i32
    %33 = arith.cmpi ne, %32, %c0_i32_32 : i32
    scf.if %33 {
      %c0_33 = arith.constant 0 : index
      %c0_34 = arith.constant 0 : index
      %34 = vector.load %arg5[%c0_33, %c0_34] : memref<8x128xf32, #tpu.memory_space<vmem>>, vector<8x128xf32>
      %cst = arith.constant dense<0.000000e+00> : vector<8xf32>
      %35 = vector.multi_reduction <add>, %34, %cst [1] : vector<8x128xf32> to vector<8xf32>
      %36 = vector.shape_cast %35 : vector<8xf32> to vector<8x1xf32>
      %c0_35 = arith.constant 0 : index
      %c0_36 = arith.constant 0 : index
      %37 = vector.load %arg6[%c0_35, %c0_36] : memref<8x128xf32, #tpu.memory_space<vmem>>, vector<8x128xf32>
      %cst_37 = arith.constant dense<0.000000e+00> : vector<8xf32>
      %38 = vector.multi_reduction <add>, %37, %cst_37 [1] : vector<8x128xf32> to vector<8xf32>
      %39 = vector.shape_cast %38 : vector<8xf32> to vector<8x1xf32>
      %c0_38 = arith.constant 0 : index
      %c0_39 = arith.constant 0 : index
      %40 = vector.load %arg7[%c0_38, %c0_39] : memref<8x128xf32, #tpu.memory_space<vmem>>, vector<8x128xf32>
      %cst_40 = arith.constant dense<0.000000e+00> : vector<8xf32>
      %41 = vector.multi_reduction <add>, %40, %cst_40 [1] : vector<8x128xf32> to vector<8xf32>
      %42 = vector.shape_cast %41 : vector<8xf32> to vector<8x1xf32>
      %43 = math.sqrt %39 : vector<8x1xf32>
      %44 = math.sqrt %42 : vector<8x1xf32>
      %45 = arith.mulf %43, %44 : vector<8x1xf32>
      %cst_41 = arith.constant 1.000000e-15 : f32
      %46 = vector.broadcast %cst_41 : f32 to vector<8x1xf32>
      %47 = arith.addf %45, %46 : vector<8x1xf32>
      %48 = arith.divf %36, %47 : vector<8x1xf32>
      %cst_42 = arith.constant 1.000000e+00 : f32
      %49 = vector.broadcast %cst_42 : f32 to vector<8x1xf32>
      %50 = arith.subf %49, %48 : vector<8x1xf32>
      %c0_43 = arith.constant 0 : index
      %c0_44 = arith.constant 0 : index
      %51 = vector.load %arg4[%c0_43, %c0_44] : memref<8x1xf32, #tpu.memory_space<vmem>>, vector<8x1xf32>
      tpu.vector_store %arg4[%c0_43, %c0_44], %50 {strides = array<i32>} : memref<8x1xf32, #tpu.memory_space<vmem>>, vector<8x1xf32>,
    } else {
    }
    return
  }
  func.func @transform_0(%arg0: i32, %arg1: i32) -> (i32, i32) {
    %c0_i32 = arith.constant 0 : i32
    return %arg0, %arg1 : i32, i32
  }
  func.func @transform_1(%arg0: i32, %arg1: i32) -> (i32, i32) {
    %c0_i32 = arith.constant 0 : i32
    return %arg0, %arg1 : i32, i32
  }
  func.func @transform_2(%arg0: i32, %arg1: i32) -> (i32, i32) {
    %c0_i32 = arith.constant 0 : i32
    %c0_i32_0 = arith.constant 0 : i32
    return %arg0, %c0_i32 : i32, i32
  }
}

</mosaic_0001>

<llo_original>
// kernel: tpu_custom_call.1
$region0: #{tpu_custom_call.1}
  #allocation0 [shape = 'u32[]', space=smem, size = 0x4, offset = 0x4, fixed_abs, tag = 'smem constant byte address 0x4 - core index']
  #allocation1 [shape = 'u32[144,128]{1,0:T(1,128)}', space=vmem, size = 0x12000, scoped, tag = 'internal scratch']
  #allocation2 [shape = 'f32[8,128]{1,0:T(8,128)}', space=vmem, size = 0x1000, scoped, tag = 'scratch operand']
  #allocation3 [shape = 'f32[8,128]{1,0:T(8,128)}', space=vmem, size = 0x1000, scoped, tag = 'scratch operand']
  #allocation4 [shape = 'f32[8,128]{1,0:T(8,128)}', space=vmem, size = 0x1000, scoped, tag = 'scratch operand']
  %s0 = inlined_call_operand.hbm [shape: f32[2,256], index: 0, kind: input, shape index: {}]
  %s1 = inlined_call_operand.hbm [shape: f32[2,256], index: 1, kind: input, shape index: {}]
  %s2 = inlined_call_operand.vmem [shape: f32[2,1], index: 2, kind: output, shape index: {}]
  %s3 = sld [smem:[#allocation0]]
  $region64: #{tpu_custom_call.1} parent=0
    _
  %s5 = ssub.s32 1, %s3
  %s6 = scalar_select 0, %s5, %s3
  $region1: #{tpu_custom_call.1} parent=0
    #allocation5 [shape = 'u8[8192]{0}', space=vmem, size = 0x2000, scoped, tag = 'input window, operand 0, single buffered']
    #allocation6 [shape = 's32[1]{0}', space=sflag, size = 0x4, scoped, tag = 'scoped memory for tpu_custom_call.1']
    #allocation7 [shape = 'u8[8192]{0}', space=vmem, size = 0x2000, scoped, tag = 'input window, operand 1, single buffered']
    #allocation8 [shape = 's32[1]{0}', space=sflag, size = 0x4, scoped, tag = 'scoped memory for tpu_custom_call.1']
    #allocation9 [shape = 'u8[4096]{0}', space=vmem, size = 0x1000, scoped, tag = 'output window, operand 0, single buffered']
    %7 = vsyncpa [#allocation6], 0
    %8 = vsyncpa [#allocation8], 0
    // Predicated region
    $region2: #{tpu_custom_call.1} parent=1 // pred_check
      _
    $region3: #{tpu_custom_call.1} parent=1 // pred_check_branch
      %10 = sbr.rel (0) target = $region5
    $region4: #{tpu_custom_call.1} parent=1 // pred_region
      %s12 = ssub.s32 256, 64
      %13 = vsyncadd [#allocation6], %s12
      %s14 = sshll.u32 [#allocation5], 4
      %s15 = int_to_ptr.vmem [resolvable:$true] %s14
      %20 = dma.hbm_to_vmem [thread:$0]  %s0, 64, %s15, [#allocation6], 64, 64, 4
    $region5: #{tpu_custom_call.1} parent=1 // pred_fallthru
      _
    // Predicated region
    $region6: #{tpu_custom_call.1} parent=1 // pred_check
      _
    $region7: #{tpu_custom_call.1} parent=1 // pred_check_branch
      %22 = sbr.rel (0) target = $region9
    $region8: #{tpu_custom_call.1} parent=1 // pred_region
      %s24 = ssub.s32 256, 64
      %25 = vsyncadd [#allocation8], %s24
      %s26 = sshll.u32 [#allocation7], 4
      %s27 = int_to_ptr.vmem [resolvable:$true] %s26
      %32 = dma.hbm_to_vmem [thread:$0]  %s1, 64, %s27, [#allocation8], 64, 64, 4
    $region9: #{tpu_custom_call.1} parent=1 // pred_fallthru
      _
    // Predicated region
    $region10: #{tpu_custom_call.1} parent=1 // pred_check
      _
    $region11: #{tpu_custom_call.1} parent=1 // pred_check_branch
      %34 = sbr.rel (0) target = $region13
    $region12: #{tpu_custom_call.1} parent=1 // pred_region
      %35 = dma.done [#allocation6], 256
    $region13: #{tpu_custom_call.1} parent=1 // pred_fallthru
      _
    // Predicated region
    $region14: #{tpu_custom_call.1} parent=1 // pred_check
      _
    $region15: #{tpu_custom_call.1} parent=1 // pred_check_branch
      %37 = sbr.rel (0) target = $region17
    $region16: #{tpu_custom_call.1} parent=1 // pred_region
      %38 = dma.done [#allocation8], 256
    $region17: #{tpu_custom_call.1} parent=1 // pred_fallthru
      _
    %p39 = scmp.eq.s32.totalorder 0, 0
    // Predicated region
    $region18: #{tpu_custom_call.1} parent=1 // pred_check
      %p40 = pneg %p39
    $region19: #{tpu_custom_call.1} parent=1 // pred_check_branch
      %42 = sbr.rel (%p40) target = $region21
    $region20: #{tpu_custom_call.1} parent=1 // pred_region
      %43 = vst [vmem:[#allocation2] sm:$0xff] 0.0
      %44 = vst [vmem:[#allocation3] sm:$0xff] 0.0
      %45 = vst [vmem:[#allocation4] sm:$0xff] 0.0
    $region21: #{tpu_custom_call.1} parent=1 // pred_fallthru
      _
    %v46 = vld [vmem:[#allocation5] sm:$0x3]
    %v47 = vld [vmem:[#allocation5 + $0x4] sm:$0x3]
    %v48 = vld [vmem:[#allocation5 + $0x8] sm:$0x3]
    %v49 = vld [vmem:[#allocation5 + $0xc] sm:$0x3]
    %v50 = vld [vmem:[#allocation7] sm:$0x3]
    %v51 = vld [vmem:[#allocation7 + $0x4] sm:$0x3]
    %v52 = vld [vmem:[#allocation7 + $0x8] sm:$0x3]
    %v53 = vld [vmem:[#allocation7 + $0xc] sm:$0x3]
    %v54 = vld [vmem:[#allocation2] sm:$0xff]
    %v55 = vmul.f32 %v46, %v50
    %v56 = vmul.f32 %v47, %v51
    %v57 = vmul.f32 %v48, %v52
    %v58 = vmul.f32 %v49, %v53
    %v63 = vcombine.low %v55, %v56
    %v64 = vcombine.low %v57, %v58
    %v66 = vunpack.c.l.s4 1983009808
    %v67 = vunpack.c.0.s8 %v66
    %v68 = vlaneseq
    %v69 = vshrl.u32 %v68, 7
    %v70 = vsub.s32 %v67, %v69
    %v71 = vrot.slane %v63, %v70
    %v73 = vunpack.c.l.s4 1983009808
    %v74 = vunpack.c.0.s8 %v73
    %v75 = vlaneseq
    %v76 = vshrl.u32 %v75, 7
    %v77 = vsub.s32 %v74, %v76
    %v78 = vrot.slane %v64, %v77
    %v79 = vcombine.low %v71, %v78
    %v81 = vadd.f32 %v54, %v79
    %82 = vst [vmem:[#allocation2] sm:$0xff] %v81
    %v83 = vld [vmem:[#allocation3] sm:$0xff]
    %v84 = vmul.f32 %v46, %v46
    %v85 = vmul.f32 %v47, %v47
    %v86 = vmul.f32 %v48, %v48
    %v87 = vmul.f32 %v49, %v49
    %v92 = vcombine.low %v84, %v85
    %v93 = vcombine.low %v86, %v87
    %v95 = vunpack.c.l.s4 1983009808
    %v96 = vunpack.c.0.s8 %v95
    %v97 = vlaneseq
    %v98 = vshrl.u32 %v97, 7
    %v99 = vsub.s32 %v96, %v98
    %v100 = vrot.slane %v92, %v99
    %v102 = vunpack.c.l.s4 1983009808
    %v103 = vunpack.c.0.s8 %v102
    %v104 = vlaneseq
    %v105 = vshrl.u32 %v104, 7
    %v106 = vsub.s32 %v103, %v105
    %v107 = vrot.slane %v93, %v106
    %v108 = vcombine.low %v100, %v107
    %v110 = vadd.f32 %v83, %v108
    %111 = vst [vmem:[#allocation3] sm:$0xff] %v110
    %v112 = vld [vmem:[#allocation4] sm:$0xff]
    %v113 = vmul.f32 %v50, %v50
    %v114 = vmul.f32 %v51, %v51
    %v115 = vmul.f32 %v52, %v52
    %v116 = vmul.f32 %v53, %v53
    %v121 = vcombine.low %v113, %v114
    %v122 = vcombine.low %v115, %v116
    %v124 = vunpack.c.l.s4 1983009808
    %v125 = vunpack.c.0.s8 %v124
    %v126 = vlaneseq
    %v127 = vshrl.u32 %v126, 7
    %v128 = vsub.s32 %v125, %v127
    %v129 = vrot.slane %v121, %v128
    %v131 = vunpack.c.l.s4 1983009808
    %v132 = vunpack.c.0.s8 %v131
    %v133 = vlaneseq
    %v134 = vshrl.u32 %v133, 7
    %v135 = vsub.s32 %v132, %v134
    %v136 = vrot.slane %v122, %v135
    %v137 = vcombine.low %v129, %v136
    %v139 = vadd.f32 %v112, %v137
    %140 = vst [vmem:[#allocation4] sm:$0xff] %v139
    %v141 = vld [vmem:[#allocation5 + $0x2] sm:$0x3]
    %v142 = vld [vmem:[#allocation5 + $0x6] sm:$0x3]
    %v143 = vld [vmem:[#allocation5 + $0xa] sm:$0x3]
    %v144 = vld [vmem:[#allocation5 + $0xe] sm:$0x3]
    %v145 = vld [vmem:[#allocation7 + $0x2] sm:$0x3]
    %v146 = vld [vmem:[#allocation7 + $0x6] sm:$0x3]
    %v147 = vld [vmem:[#allocation7 + $0xa] sm:$0x3]
    %v148 = vld [vmem:[#allocation7 + $0xe] sm:$0x3]
    %v149 = vld [vmem:[#allocation2] sm:$0xff]
    %v150 = vmul.f32 %v141, %v145
    %v151 = vmul.f32 %v142, %v146
    %v152 = vmul.f32 %v143, %v147
    %v153 = vmul.f32 %v144, %v148
    %v158 = vcombine.low %v150, %v151
    %v159 = vcombine.low %v152, %v153
    %v161 = vunpack.c.l.s4 1983009808
    %v162 = vunpack.c.0.s8 %v161
    %v163 = vlaneseq
    %v164 = vshrl.u32 %v163, 7
    %v165 = vsub.s32 %v162, %v164
    %v166 = vrot.slane %v158, %v165
    %v168 = vunpack.c.l.s4 1983009808
    %v169 = vunpack.c.0.s8 %v168
    %v170 = vlaneseq
    %v171 = vshrl.u32 %v170, 7
    %v172 = vsub.s32 %v169, %v171
    %v173 = vrot.slane %v159, %v172
    %v174 = vcombine.low %v166, %v173
    %v176 = vadd.f32 %v149, %v174
    %177 = vst [vmem:[#allocation2] sm:$0xff] %v176
    %v178 = vld [vmem:[#allocation3] sm:$0xff]
    %v179 = vmul.f32 %v141, %v141
    %v180 = vmul.f32 %v142, %v142
    %v181 = vmul.f32 %v143, %v143
    %v182 = vmul.f32 %v144, %v144
    %v187 = vcombine.low %v179, %v180
    %v188 = vcombine.low %v181, %v182
    %v190 = vunpack.c.l.s4 1983009808
    %v191 = vunpack.c.0.s8 %v190
    %v192 = vlaneseq
    %v193 = vshrl.u32 %v192, 7
    %v194 = vsub.s32 %v191, %v193
    %v195 = vrot.slane %v187, %v194
    %v197 = vunpack.c.l.s4 1983009808
    %v198 = vunpack.c.0.s8 %v197
    %v199 = vlaneseq
    %v200 = vshrl.u32 %v199, 7
    %v201 = vsub.s32 %v198, %v200
    %v202 = vrot.slane %v188, %v201
    %v203 = vcombine.low %v195, %v202
    %v205 = vadd.f32 %v178, %v203
    %206 = vst [vmem:[#allocation3] sm:$0xff] %v205
    %v207 = vld [vmem:[#allocation4] sm:$0xff]
    %v208 = vmul.f32 %v145, %v145
    %v209 = vmul.f32 %v146, %v146
    %v210 = vmul.f32 %v147, %v147
    %v211 = vmul.f32 %v148, %v148
    %v216 = vcombine.low %v208, %v209
    %v217 = vcombine.low %v210, %v211
    %v219 = vunpack.c.l.s4 1983009808
    %v220 = vunpack.c.0.s8 %v219
    %v221 = vlaneseq
    %v222 = vshrl.u32 %v221, 7
    %v223 = vsub.s32 %v220, %v222
    %v224 = vrot.slane %v216, %v223
    %v226 = vunpack.c.l.s4 1983009808
    %v227 = vunpack.c.0.s8 %v226
    %v228 = vlaneseq
    %v229 = vshrl.u32 %v228, 7
    %v230 = vsub.s32 %v227, %v229
    %v231 = vrot.slane %v217, %v230
    %v232 = vcombine.low %v224, %v231
    %v234 = vadd.f32 %v207, %v232
    %235 = vst [vmem:[#allocation4] sm:$0xff] %v234
    // Predicated region
    $region22: #{tpu_custom_call.1} parent=1 // pred_check
      %p236 = pneg %p39
    $region23: #{tpu_custom_call.1} parent=1 // pred_check_branch
      %238 = sbr.rel (%p236) target = $region25
    $region24: #{tpu_custom_call.1} parent=1 // pred_region
      %v239 = vld [vmem:[#allocation2] sm:$0xff]
      %240 = vadd.xlane.f32.xlu0 %v239
      %v241 = vpop.xlane.xlu0 %240
      %v242 = vld [vmem:[#allocation3] sm:$0xff]
      %243 = vadd.xlane.f32.xlu0 %v242
      %v244 = vpop.xlane.xlu0 %243
      %v245 = vld [vmem:[#allocation4] sm:$0xff]
      %246 = vadd.xlane.f32.xlu0 %v245
      %v247 = vpop.xlane.xlu0 %246
      %v248 = vrsqrt.pop %v244
      %v249 = vmul.f32 %v244, %v248
      %vm250 = vcmp.eq.f32.partialorder %v244, inf
      %v251 = vsel %vm250, %v244, %v249
      %vm252 = vcmp.eq.f32.partialorder %v244, 0.0
      %v253 = vand.u32 %v244, 2147483648
      %v254 = vsel %vm252, %v253, %v251
      %v255 = vrsqrt.pop %v247
      %v256 = vmul.f32 %v247, %v255
      %vm257 = vcmp.eq.f32.partialorder %v247, inf
      %v258 = vsel %vm257, %v247, %v256
      %vm259 = vcmp.eq.f32.partialorder %v247, 0.0
      %v260 = vand.u32 %v247, 2147483648
      %v261 = vsel %vm259, %v260, %v258
      %v262 = vmul.f32 %v254, %v261
      %v263 = vadd.f32 %v262, 1e-15
      %v264 = vrcp.pop %v263
      %v265 = vmul.f32 %v241, %v264
      %v266 = vsub.f32 1.0, %v265
      %vm267 = vcmask 7168
      %268 = vst.msk [vmem:[#allocation9] sm:$0xff] %vm267, %v266
    $region25: #{tpu_custom_call.1} parent=1 // pred_fallthru
      _
    // Predicated region
    $region26: #{tpu_custom_call.1} parent=1 // pred_check
      _
    $region27: #{tpu_custom_call.1} parent=1 // pred_check_branch
      %270 = sbr.rel (0) target = $region29
    $region28: #{tpu_custom_call.1} parent=1 // pred_region
      // Predicated region
      $region30: #{tpu_custom_call.1} parent=28 // pred_check
        _
      $region31: #{tpu_custom_call.1} parent=28 // pred_check_branch
        %272 = sbr.rel (0) target = $region33
      $region32: #{tpu_custom_call.1} parent=28 // pred_region
        // Predicated region
        $region34: #{tpu_custom_call.1} parent=32 // pred_check
          _
        $region35: #{tpu_custom_call.1} parent=32 // pred_check_branch
          %274 = sbr.rel target = $region37
        $region36: #{tpu_custom_call.1} parent=32 // pred_region
          // Predicated region
          $region49: #{tpu_custom_call.1} parent=36 // pred_check
            _
          $region50: #{tpu_custom_call.1} parent=36 // pred_check_branch
            %290 = sbr.rel (0) target = $region52
          $region51: #{tpu_custom_call.1} parent=36 // pred_region
            %s292 = ssub.s32 4, 1
            loop: start=0, step=1, limit=1
            $region53: #{tpu_custom_call.1} parent=51 // loop_pre_header
              _
            $region54: #{tpu_custom_call.1} parent=51 // loop_header
              %s294 = sphi 0, %s298
              %p295 = scmp.ge.s32.totalorder %s294, 1
              %s299 = sphi [#allocation9], [#allocation9]
              %s300 = sphi %s2, %s2
            $region55: #{tpu_custom_call.1} parent=51 // loop_header_branch
              %297 = sbr.rel (%p295) target = $region59
            $region56: #{tpu_custom_call.1} parent=51 // loop_body
              %v301 = vld [vmem:[%s299] sm:%s292]
              %302 = vst [vmem:[%s300] sm:%s292] %v301
            $region57: #{tpu_custom_call.1} parent=51 // loop_footer
              %s298 = sadd.s32 1, %s294
            $region58: #{tpu_custom_call.1} parent=51 // loop_footer_branch
              %293 = sbr.rel target = $region54
            $region59: #{tpu_custom_call.1} parent=51 // loop_exit
              _
          $region52: #{tpu_custom_call.1} parent=36 // pred_fallthru
            _
        $region37: #{tpu_custom_call.1} parent=32 // pred_fallthru
          _
        // Predicated region
        $region38: #{tpu_custom_call.1} parent=32 // pred_check
          _
        $region39: #{tpu_custom_call.1} parent=32 // pred_check_branch
          %276 = sbr.rel (0) target = $region41
        $region40: #{tpu_custom_call.1} parent=32 // pred_region
          %s278 = ssub.s32 4, 1
          loop: start=0, step=1, limit=1
          $region42: #{tpu_custom_call.1} parent=40 // loop_pre_header
            _
          $region43: #{tpu_custom_call.1} parent=40 // loop_header
            %s280 = sphi 0, %s284
            %p281 = scmp.ge.s32.totalorder %s280, 1
            %s285 = sphi [#allocation9], [#allocation9]
            %s286 = sphi %s2, %s2
          $region44: #{tpu_custom_call.1} parent=40 // loop_header_branch
            %283 = sbr.rel (%p281) target = $region48
          $region45: #{tpu_custom_call.1} parent=40 // loop_body
            %v287 = vld [vmem:[%s285] sm:%s278]
            %288 = vst [vmem:[%s286] sm:%s278] %v287
          $region46: #{tpu_custom_call.1} parent=40 // loop_footer
            %s284 = sadd.s32 1, %s280
          $region47: #{tpu_custom_call.1} parent=40 // loop_footer_branch
            %279 = sbr.rel target = $region43
          $region48: #{tpu_custom_call.1} parent=40 // loop_exit
            _
        $region41: #{tpu_custom_call.1} parent=32 // pred_fallthru
          _
      $region33: #{tpu_custom_call.1} parent=28 // pred_fallthru
        _
      %303 = vnop
    $region29: #{tpu_custom_call.1} parent=1 // pred_fallthru
      _
    // Predicated region
    $region60: #{tpu_custom_call.1} parent=1 // pred_check
      _
    $region61: #{tpu_custom_call.1} parent=1 // pred_check_branch
      %305 = sbr.rel (0) target = $region63
    $region62: #{tpu_custom_call.1} parent=1 // pred_region
      _
    $region63: #{tpu_custom_call.1} parent=1 // pred_fallthru
      _
    %306 = vsyncpa [#allocation6], 1
    %307 = vsyncpa [#allocation8], 1

</llo_original>
